<compile_context>
chip_gen: v7x
topology: tpu7x:2x2x1
jax: 0.10.0
libtpu: 0.0.40
codegen_flags: <defaults>
</compile_context>

<pallas_src>
import jax
import jax.numpy as jnp
from jax.experimental import pallas as pl
from jax.experimental.pallas import tpu as pltpu


def _block_kernel(x_ref, xin_ref, o_ref):
    # x_ref: (tb, tf) gate input; o_ref: (tb, tf)
    # xin_ref is either (tb, tf)      -- last timestep already selected by the
    #                                    squeezed BlockSpec (strided DMA), or
    #                   (tb, S, tf)   -- contiguous row block; take last step here.
    if xin_ref.ndim == 3:
        xin_last = xin_ref[:, xin_ref.shape[1] - 1, :]
    else:
        xin_last = xin_ref[...]
    o_ref[...] = jnp.maximum((1.0 + x_ref[...]) * xin_last, 0.0)


def block_forward(x, x_input, *, block_rows=None, vmem_budget_bytes=None):
    """Computes max((1 + x) * x_input[:, -1, :], 0) with a Pallas TPU kernel."""
    B, F = x.shape
    Bi, S, Fi = x_input.shape
    assert B == Bi and F == Fi, "x must broadcast against x_input[:, -1, :]"
    itemsize = jnp.dtype(x.dtype).itemsize

    # Tiny rows: a strided last-step copy still burns a full ~512 B burst per
    # row, so just DMA the whole contiguous (S, F) row and slice in-kernel.
    fetch_all_steps = S * F * itemsize <= 1024

    # Conservative per-step VMEM budget: ~half of the smallest scoped default
    # (v5e 16 MiB), so double-buffered tiles fit on v5e/v6e/v7x alike.
    if vmem_budget_bytes is None:
        vmem_budget_bytes = 8 * 1024 * 1024

    def bytes_per_row(tf_):
        xin_elems = S * tf_ if fetch_all_steps else tf_
        # double-buffered x tile + x_input slab tile + out tile, per batch row
        return 2 * (tf_ + xin_elems + tf_) * itemsize

    # Feature tile: normally all of F; only tile F if even 8 rows won't fit.
    tf = F
    if 8 * bytes_per_row(F) > vmem_budget_bytes and F > 128:
        tf = (vmem_budget_bytes // (8 * bytes_per_row(1))) // 128 * 128
        tf = max(128, min(tf, (F // 128) * 128))

    tb_budget = max(8, (vmem_budget_bytes // bytes_per_row(tf)) // 8 * 8)

    if block_rows is not None:
        tb = min(int(block_rows), B)
        if tb < B:                      # (8,128): sublane dim must be mult of 8
            tb = max(8, (tb // 8) * 8)
    elif B < 16:
        tb = B                          # single tiny step; full-dim block is legal
    else:
        # Force >=2 (target 4) parallel steps so v7x's two TensorCores both get
        # work and input/output DMAs overlap across steps.
        desired_steps = 4 if B >= 64 else 2
        tb = pl.cdiv(B, desired_steps)
        # ...but keep each x/out tile >= ~1 MiB when the batch allows
        # (~85% of HBM roofline at ~1 MiB tiles vs ~30% at 64 KiB).
        min_rows = pl.cdiv(1 << 20, tf * itemsize)
        tb = max(tb, min(min_rows, B // 2))
        tb = max(8, (tb // 8) * 8)
    tb = min(tb, tb_budget, B)
    if tb < B:
        tb = max(8, (tb // 8) * 8)

    grid = (pl.cdiv(B, tb), pl.cdiv(F, tf))

    if fetch_all_steps:
        xin_spec = pl.BlockSpec((tb, S, tf), lambda i, j: (i, 0, j))
    else:
        # Only the last timestep leaves HBM: S axis squeezed, index pinned to S-1.
        xin_spec = pl.BlockSpec((tb, None, tf), lambda i, j: (i, S - 1, j))

    return pl.pallas_call(
        _block_kernel,
        out_shape=jax.ShapeDtypeStruct((B, F), x.dtype),
        grid=grid,
        in_specs=[
            pl.BlockSpec((tb, tf), lambda i, j: (i, j)),
            xin_spec,
        ],
        out_specs=pl.BlockSpec((tb, tf), lambda i, j: (i, j)),
        compiler_params=pltpu.CompilerParams(
            dimension_semantics=("parallel", "parallel"),
            vmem_limit_bytes=32 * 1024 * 1024,
        ),
    )(x, x_input)


def _reference(x, x_input):
    return jnp.maximum((1.0 + x) * x_input[:, -1, :], 0.0)


if __name__ == "__main__":
    key = jax.random.PRNGKey(0)
    k1, k2, k3, k4, k5, k6 = jax.random.split(key, 6)

    # 1) Small shapes matching the module spec (single step, contiguous-row path).
    B, S, F = 2, 8, 32
    x = jax.random.normal(k1, (B, F), dtype=jnp.float32)
    x_input = jax.random.normal(k2, (B, S, F), dtype=jnp.float32)
    out = jax.block_until_ready(block_forward(x, x_input))
    assert out.shape == (B, F)
    assert jnp.allclose(out, _reference(x, x_input), atol=1e-6), "mismatch (small)"

    # 2) Larger, lane-dense shape: multi-step parallel grid + strided last-step DMA.
    B2, S2, F2 = 512, 4, 256
    x2 = jax.random.normal(k3, (B2, F2), dtype=jnp.float32)
    x_input2 = jax.random.normal(k4, (B2, S2, F2), dtype=jnp.float32)
    out2 = jax.block_until_ready(block_forward(x2, x_input2))
    assert out2.shape == (B2, F2)
    assert jnp.allclose(out2, _reference(x2, x_input2), atol=1e-6), "mismatch (tiled)"

    # 3) Ragged batch + non-multiple-of-8 user block_rows (gets rounded to 96).
    B3, S3, F3 = 200, 6, 128
    x3 = jax.random.normal(k5, (B3, F3), dtype=jnp.float32)
    x_input3 = jax.random.normal(k6, (B3, S3, F3), dtype=jnp.float32)
    out3 = jax.block_until_ready(block_forward(x3, x_input3, block_rows=100))
    assert out3.shape == (B3, F3)
    assert jnp.allclose(out3, _reference(x3, x_input3), atol=1e-6), "mismatch (ragged)"

    print("KERNEL_OK")
</pallas_src>

<mosaic_0001>
module attributes {stable_mosaic.version = 11 : i64} {
  func.func @_block_kernel(%arg0: i32, %arg1: i32, %arg2: memref<2x32xf32, #tpu.memory_space<vmem>>, %arg3: memref<2x8x32xf32, #tpu.memory_space<vmem>>, %arg4: memref<2x32xf32, #tpu.memory_space<vmem>>) attributes {dimension_semantics = [#tpu.dimension_semantics<parallel>, #tpu.dimension_semantics<parallel>], iteration_bounds = array<i64: 1, 1>, scalar_prefetch = 0 : i64, scratch_operands = 0 : i64, tpu.core_type = #tpu.core_type<tc>, window_params = [{transform_indices = @transform_0, window_bounds = array<i64: 2, 32>}, {transform_indices = @transform_1, window_bounds = array<i64: 2, 8, 32>}, {transform_indices = @transform_2, window_bounds = array<i64: 2, 32>}]} {
    %c0 = arith.constant 0 : index
    %c7 = arith.constant 7 : index
    %c0_0 = arith.constant 0 : index
    %0 = vector.load %arg3[%c0, %c7, %c0_0] : memref<2x8x32xf32, #tpu.memory_space<vmem>>, vector<2x1x32xf32>
    %1 = vector.shape_cast %0 : vector<2x1x32xf32> to vector<2x32xf32>
    %c0_1 = arith.constant 0 : index
    %c0_2 = arith.constant 0 : index
    %2 = vector.load %arg2[%c0_1, %c0_2] : memref<2x32xf32, #tpu.memory_space<vmem>>, vector<2x32xf32>
    %cst = arith.constant 1.000000e+00 : f32
    %3 = vector.broadcast %cst : f32 to vector<2x32xf32>
    %4 = arith.addf %3, %2 : vector<2x32xf32>
    %5 = arith.mulf %4, %1 : vector<2x32xf32>
    %cst_3 = arith.constant 0.000000e+00 : f32
    %6 = vector.broadcast %cst_3 : f32 to vector<2x32xf32>
    %7 = arith.maximumf %5, %6 : vector<2x32xf32>
    %c0_4 = arith.constant 0 : index
    %c0_5 = arith.constant 0 : index
    %8 = vector.load %arg4[%c0_4, %c0_5] : memref<2x32xf32, #tpu.memory_space<vmem>>, vector<2x32xf32>
    tpu.vector_store %arg4[%c0_4, %c0_5], %7 {strides = array<i32>} : memref<2x32xf32, #tpu.memory_space<vmem>>, vector<2x32xf32>,
    return
  }
  func.func @transform_0(%arg0: i32, %arg1: i32) -> (i32, i32) {
    %c0_i32 = arith.constant 0 : i32
    return %arg0, %arg1 : i32, i32
  }
  func.func @transform_1(%arg0: i32, %arg1: i32) -> (i32, i32, i32) {
    %c0_i32 = arith.constant 0 : i32
    %c0_i32_0 = arith.constant 0 : i32
    return %arg0, %c0_i32, %arg1 : i32, i32, i32
  }
  func.func @transform_2(%arg0: i32, %arg1: i32) -> (i32, i32) {
    %c0_i32 = arith.constant 0 : i32
    return %arg0, %arg1 : i32, i32
  }
}

</mosaic_0001>

<llo_original>
// kernel: tpu_custom_call.1
$region0: #{tpu_custom_call.1}
  #allocation0 [shape = 'u32[]', space=smem, size = 0x4, offset = 0x4, fixed_abs, tag = 'smem constant byte address 0x4 - core index']
  #allocation1 [shape = 'u32[144,128]{1,0:T(1,128)}', space=vmem, size = 0x12000, scoped, tag = 'internal scratch']
  %s0 = inlined_call_operand.hbm [shape: f32[2,32], index: 0, kind: input, shape index: {}]
  %s1 = inlined_call_operand.hbm [shape: f32[2,8,32], index: 1, kind: input, shape index: {}]
  %s2 = inlined_call_operand.hbm [shape: f32[2,32], index: 2, kind: output, shape index: {}]
  %s3 = sld [smem:[#allocation0]]
  $region26: #{tpu_custom_call.1} parent=0
    _
  %s5 = ssub.s32 1, %s3
  %s6 = scalar_select 0, %s5, %s3
  $region1: #{tpu_custom_call.1} parent=0
    #allocation2 [shape = 'u8[1024]{0}', space=vmem, size = 0x400, scoped, tag = 'input window, operand 0, single buffered']
    #allocation3 [shape = 's32[1]{0}', space=sflag, size = 0x4, scoped, tag = 'scoped memory for tpu_custom_call.1']
    #allocation4 [shape = 's32[1]{0}', space=sflag, size = 0x4, scoped, tag = 'scoped memory for tpu_custom_call.1']
    #allocation5 [shape = 'u8[8192]{0}', space=vmem, size = 0x2000, scoped, tag = 'input window, operand 1, single buffered']
    #allocation6 [shape = 's32[1]{0}', space=sflag, size = 0x4, scoped, tag = 'scoped memory for tpu_custom_call.1']
    #allocation7 [shape = 'u8[1024]{0}', space=vmem, size = 0x400, scoped, tag = 'output window, operand 0, single buffered']
    %7 = vsyncpa [#allocation3], 0
    %8 = vsyncpa [#allocation6], 0
    %9 = vsyncpa [#allocation4], 0
    // Predicated region
    $region2: #{tpu_custom_call.1} parent=1 // pred_check
      _
    $region3: #{tpu_custom_call.1} parent=1 // pred_check_branch
      %11 = sbr.rel (0) target = $region5
    $region4: #{tpu_custom_call.1} parent=1 // pred_region
      %s13 = ssub.s32 32, 32
      %14 = vsyncadd [#allocation3], %s13
      %s16 = sshll.u32 [#allocation2], 4
      %s17 = int_to_ptr.vmem [resolvable:$true] %s16
      %19 = dma.hbm_to_vmem [thread:$0]  %s0, 32, %s17, [#allocation3]
    $region5: #{tpu_custom_call.1} parent=1 // pred_fallthru
      _
    // Predicated region
    $region6: #{tpu_custom_call.1} parent=1 // pred_check
      _
    $region7: #{tpu_custom_call.1} parent=1 // pred_check_branch
      %21 = sbr.rel (0) target = $region9
    $region8: #{tpu_custom_call.1} parent=1 // pred_region
      %s23 = ssub.s32 256, 256
      %24 = vsyncadd [#allocation6], %s23
      %s25 = sshll.u32 [#allocation5], 4
      %s26 = int_to_ptr.vmem [resolvable:$true] %s25
      %31 = dma.hbm_to_vmem [thread:$0]  %s1, 256, %s26, [#allocation6], 128, 128, 8
    $region9: #{tpu_custom_call.1} parent=1 // pred_fallthru
      _
    // Predicated region
    $region10: #{tpu_custom_call.1} parent=1 // pred_check
      _
    $region11: #{tpu_custom_call.1} parent=1 // pred_check_branch
      %33 = sbr.rel (0) target = $region13
    $region12: #{tpu_custom_call.1} parent=1 // pred_region
      %34 = dma.done [#allocation3], 32
    $region13: #{tpu_custom_call.1} parent=1 // pred_fallthru
      _
    // Predicated region
    $region14: #{tpu_custom_call.1} parent=1 // pred_check
      _
    $region15: #{tpu_custom_call.1} parent=1 // pred_check_branch
      %36 = sbr.rel (0) target = $region17
    $region16: #{tpu_custom_call.1} parent=1 // pred_region
      %37 = dma.done [#allocation6], 256
    $region17: #{tpu_custom_call.1} parent=1 // pred_fallthru
      _
    %v38 = vld [vmem:[#allocation5 + $0x7] sm:$0x1]
    %v39 = vld [vmem:[#allocation5 + $0xf] sm:$0x1]
    %v40 = vld [vmem:[#allocation2] sm:$0x3]
    %v41 = vadd.f32 %v40, 1.0
    %v44 = vrot.slane %v39, 7
    %vm45 = vcmask 1041409
    %v46 = vsel %vm45, %v44, %v38
    %v48 = vmul.f32 %v41, %v46
    %v49 = vmax.f32 %v48, 0.0
    %vm50 = vcmask 254976
    %51 = vst.msk [vmem:[#allocation7] sm:$0x3] %vm50, %v49
    // Predicated region
    $region18: #{tpu_custom_call.1} parent=1 // pred_check
      _
    $region19: #{tpu_custom_call.1} parent=1 // pred_check_branch
      %53 = sbr.rel (0) target = $region21
    $region20: #{tpu_custom_call.1} parent=1 // pred_region
      %s55 = ssub.s32 32, 32
      %56 = vsyncadd [#allocation4], %s55
      %s58 = sshll.u32 [#allocation7], 4
      %s59 = int_to_ptr.vmem [resolvable:$true] %s58
      %61 = dma.vmem_to_hbm [thread:$0]  %s59, 32, %s2, [#allocation4]
    $region21: #{tpu_custom_call.1} parent=1 // pred_fallthru
      _
    // Predicated region
    $region22: #{tpu_custom_call.1} parent=1 // pred_check
      _
    $region23: #{tpu_custom_call.1} parent=1 // pred_check_branch
      %63 = sbr.rel (0) target = $region25
    $region24: #{tpu_custom_call.1} parent=1 // pred_region
      %64 = dma.done [#allocation4], 32
    $region25: #{tpu_custom_call.1} parent=1 // pred_fallthru
      _
    %65 = vsyncpa [#allocation3], 1
    %66 = vsyncpa [#allocation6], 1
    %67 = vsyncpa [#allocation4], 1

</llo_original>
